<compile_context>
chip_gen: v7x
topology: tpu7x:2x2x1
jax: 0.10.0
libtpu: 0.0.40
codegen_flags: <defaults>
</compile_context>

<pallas_src>
import functools

import jax
import jax.numpy as jnp
import numpy as np
from jax.experimental import pallas as pl
from jax.experimental.pallas import tpu as pltpu

EPS = 1e-8


def _round_up(x, m):
    return ((x + m - 1) // m) * m


def _sketchmem_kernel(q_ref,                # (TB, input_dim)
                      idx_ref,              # (TB, 1) int32 category index per row
                      slot_ref,             # (1, NCC_pad) int32 slot -> category id
                      wbc_ref, bbc_ref,     # (input_dim, 2*mem_dim), (1, 2*mem_dim)
                      bkt_ref,              # (mem_dim, M) L2-normalized base keys, transposed
                      bvo_ref,              # (M, output_dim)  base_vals @ W_out[:D]
                      ckt_ref,              # (mem_dim, NCC_pad) flattened cat keys, transposed
                      cvo_ref,              # (NCC_pad, output_dim)  cat_vals @ W_out[D:]
                      bo_ref,               # (1, output_dim)
                      o_ref,                # (TB, output_dim)
                      *, mem_dim):
    q = q_ref[...]                                                                  # [TB, in]

    # ----- one fused projection matmul for both branches, then static lane split -----
    bc = jnp.dot(q, wbc_ref[...], preferred_element_type=jnp.float32) + bbc_ref[...]  # [TB,2D]
    bq = bc[:, :mem_dim]                                                             # base query
    cq = bc[:, mem_dim:]                                                             # cat query

    # ---------------- base branch (cosine sim + softmax lookup) ----------------
    sumsq = jnp.sum(bq * bq, axis=-1, keepdims=True)
    bq_n = bq * jax.lax.rsqrt(jnp.maximum(sumsq, jnp.float32(EPS * EPS)))            # EUP rsqrt
    base_sims = jnp.dot(bq_n, bkt_ref[...], preferred_element_type=jnp.float32)      # [TB, M]
    base_sims = base_sims - jnp.max(base_sims, axis=-1, keepdims=True)
    base_e = jnp.exp(base_sims)
    base_p = base_e * pl.reciprocal(jnp.sum(base_e, axis=-1, keepdims=True), approx=True)

    # --------- category branch: dense all-bank sims + precomputed slot mask ---------
    cat_sims = jnp.dot(cq, ckt_ref[...], preferred_element_type=jnp.float32)         # [TB, NCCp]
    mask = slot_ref[...] == idx_ref[...]                                             # [TB, NCCp]
    cat_sims = jnp.where(mask, cat_sims, jnp.float32(-1e30))
    cat_sims = cat_sims - jnp.max(cat_sims, axis=-1, keepdims=True)
    cat_e = jnp.exp(cat_sims)                          # masked / padded slots underflow to 0
    cat_p = cat_e * pl.reciprocal(jnp.sum(cat_e, axis=-1, keepdims=True), approx=True)

    # ----- value lookup fused with the output FC (V @ W_out precomputed wrapper-side) -----
    o_ref[...] = (jnp.dot(base_p, bvo_ref[...], preferred_element_type=jnp.float32)
                  + jnp.dot(cat_p, cvo_ref[...], preferred_element_type=jnp.float32)
                  + bo_ref[...])


def sketchmem_forward(query, category_idxs, params):
    """query: [B, input_dim] f32, category_idxs: [B] int32 -> [B, output_dim] f32."""
    B, input_dim = query.shape
    M, mem_dim = params["base_mem_keys"].shape
    NC, C, _ = params["category_mem_keys"].shape
    output_dim = params["b_out"].shape[-1]

    # Batch tile: multiple of 8 sublanes; grow up to 512 for large B (all heavy operands
    # are grid-invariant, so per-tile streamed VMEM is tiny and larger TB amortizes the
    # ~0.35us/step pipeline overhead).
    if B >= 512:
        TB = 512
    elif B >= 256:
        TB = 256
    elif B >= 128:
        TB = 128
    else:
        TB = _round_up(B, 8)
    B_pad = _round_up(B, TB)

    q = query.astype(jnp.float32)
    idx = category_idxs.astype(jnp.int32)
    if B_pad != B:
        q = jnp.pad(q, ((0, B_pad - B), (0, 0)))
        idx = jnp.pad(idx, ((0, B_pad - B),))
    idx_col = idx.reshape(B_pad, 1)

    # ---------------- one-time wrapper-side prep (constant across the batch grid) -----
    # (1) fused projection weight / bias
    w_bc = jnp.concatenate([params["w_base"], params["w_cat"]], axis=-1)   # [in, 2D]
    b_bc = jnp.concatenate([params["b_base"], params["b_cat"]], axis=-1)   # [1, 2D]
    # (2) L2-normalized, pre-transposed base keys
    keys = params["base_mem_keys"]
    keys_n = keys / jnp.maximum(jnp.linalg.norm(keys, axis=-1, keepdims=True), EPS)
    bk_t = keys_n.T                                                        # [D, M]
    # (3) base values pre-multiplied by the base half of W_out
    bvo = params["base_mem_vals"] @ params["w_out"][:mem_dim]              # [M, out]
    # (4) flattened + lane-padded category keys (transposed) and vals @ W_out
    NCC = NC * C
    NCC_pad = _round_up(NCC, 128)
    pad = NCC_pad - NCC
    ck_flat = params["category_mem_keys"].reshape(NCC, mem_dim)
    cv_flat = params["category_mem_vals"].reshape(NCC, mem_dim)
    ck_t = jnp.pad(ck_flat, ((0, pad), (0, 0))).T                          # [D, NCC_pad]
    cvo = jnp.pad(cv_flat @ params["w_out"][mem_dim:], ((0, pad), (0, 0)))  # [NCC_pad, out]
    # (5) slot -> category row; pad columns get sentinel NC (never equals a valid idx)
    slot_row = jnp.concatenate(
        [jnp.repeat(jnp.arange(NC, dtype=jnp.int32), C),
         jnp.full((pad,), NC, dtype=jnp.int32)]).reshape(1, NCC_pad)

    grid = (B_pad // TB,)

    flops_per_row = 2 * (input_dim * 2 * mem_dim + mem_dim * M + mem_dim * NCC_pad
                         + M * output_dim + NCC_pad * output_dim)
    cost = pl.CostEstimate(
        flops=int(B_pad * flops_per_row),
        transcendentals=int(B_pad * (M + NCC_pad + 3)),
        bytes_accessed=int(4 * (B_pad * (input_dim + 1 + output_dim)
                                + w_bc.size + b_bc.size + bk_t.size + bvo.size
                                + ck_t.size + cvo.size + slot_row.size
                                + params["b_out"].size)))

    out = pl.pallas_call(
        functools.partial(_sketchmem_kernel, mem_dim=mem_dim),
        out_shape=jax.ShapeDtypeStruct((B_pad, output_dim), jnp.float32),
        grid=grid,
        in_specs=[
            pl.BlockSpec((TB, input_dim), lambda i: (i, 0)),
            pl.BlockSpec((TB, 1), lambda i: (i, 0)),
            pl.BlockSpec((1, NCC_pad), lambda i: (0, 0)),
            pl.BlockSpec((input_dim, 2 * mem_dim), lambda i: (0, 0)),
            pl.BlockSpec((1, 2 * mem_dim), lambda i: (0, 0)),
            pl.BlockSpec((mem_dim, M), lambda i: (0, 0)),
            pl.BlockSpec((M, output_dim), lambda i: (0, 0)),
            pl.BlockSpec((mem_dim, NCC_pad), lambda i: (0, 0)),
            pl.BlockSpec((NCC_pad, output_dim), lambda i: (0, 0)),
            pl.BlockSpec((1, output_dim), lambda i: (0, 0)),
        ],
        out_specs=pl.BlockSpec((TB, output_dim), lambda i: (i, 0)),
        compiler_params=pltpu.CompilerParams(dimension_semantics=("parallel",)),
        cost_estimate=cost,
    )(q, idx_col, slot_row, w_bc, b_bc, bk_t, bvo, ck_t, cvo, params["b_out"])
    return out[:B]


def sketchmem_reference(query, category_idxs, params):
    """Pure-JAX reference mirroring the PyTorch forward."""
    bq = query @ params["w_base"] + params["b_base"]                      # [B, D]
    keys = params["base_mem_keys"]
    bq_n = bq / jnp.maximum(jnp.linalg.norm(bq, axis=-1, keepdims=True), EPS)
    keys_n = keys / jnp.maximum(jnp.linalg.norm(keys, axis=-1, keepdims=True), EPS)
    base_sims = jax.nn.softmax(bq_n @ keys_n.T, axis=-1)
    base_lookup = base_sims @ params["base_mem_vals"]                     # [B, D]

    cq = query @ params["w_cat"] + params["b_cat"]                        # [B, D]
    ck = params["category_mem_keys"][category_idxs]                       # [B, C, D]
    cv = params["category_mem_vals"][category_idxs]                       # [B, C, D]
    cat_sims = jax.nn.softmax(jnp.einsum("bd,bcd->bc", cq, ck), axis=-1)  # [B, C]
    cat_lookup = jnp.einsum("bc,bcd->bd", cat_sims, cv)                   # [B, D]

    cat_in = jnp.concatenate([base_lookup, cat_lookup], axis=-1)          # [B, 2D]
    return cat_in @ params["w_out"] + params["b_out"]


def init_params(key, *, input_dim, mem_dim, base_mem_size, category_mem_size,
                num_categories, output_dim):
    ks = jax.random.split(key, 10)

    def kaiming_uniform(k, shape, fan_in):
        bound = float(np.sqrt(6.0 / fan_in))
        return jax.random.uniform(k, shape, jnp.float32, -bound, bound)

    def linear_init(kw, kb, fan_in, fan_out):
        wb = float(1.0 / np.sqrt(fan_in))
        w = jax.random.uniform(kw, (fan_in, fan_out), jnp.float32, -wb, wb)
        b = jax.random.uniform(kb, (1, fan_out), jnp.float32, -wb, wb)
        return w, b

    w_base, b_base = linear_init(ks[0], ks[1], input_dim, mem_dim)
    w_cat, b_cat = linear_init(ks[2], ks[3], input_dim, mem_dim)
    w_out, b_out = linear_init(ks[4], ks[5], 2 * mem_dim, output_dim)
    return {
        "w_base": w_base, "b_base": b_base,
        "w_cat": w_cat, "b_cat": b_cat,
        "base_mem_keys": kaiming_uniform(ks[6], (base_mem_size, mem_dim), mem_dim),
        "base_mem_vals": kaiming_uniform(ks[7], (base_mem_size, mem_dim), mem_dim),
        "category_mem_keys": kaiming_uniform(
            ks[8], (num_categories, category_mem_size, mem_dim), mem_dim),
        "category_mem_vals": kaiming_uniform(
            ks[9], (num_categories, category_mem_size, mem_dim), mem_dim),
        "w_out": w_out, "b_out": b_out,
    }


if __name__ == "__main__":
    # Small, module-consistent shapes.
    B = 8
    INPUT_DIM = 32
    MEM_DIM = 32
    BASE_MEM_SIZE = 16
    CATEGORY_MEM_SIZE = 8
    NUM_CATEGORIES = 35          # hard-coded in the PyTorch module
    OUTPUT_DIM = 32

    root = jax.random.PRNGKey(0)
    k_params, k_query, k_idx = jax.random.split(root, 3)

    params = init_params(k_params,
                         input_dim=INPUT_DIM, mem_dim=MEM_DIM,
                         base_mem_size=BASE_MEM_SIZE,
                         category_mem_size=CATEGORY_MEM_SIZE,
                         num_categories=NUM_CATEGORIES,
                         output_dim=OUTPUT_DIM)

    query = jax.random.normal(k_query, (B, INPUT_DIM), jnp.float32)
    category_idxs = jax.random.randint(k_idx, (B,), 0, NUM_CATEGORIES, jnp.int32)

    out = jax.block_until_ready(sketchmem_forward(query, category_idxs, params))
    ref = jax.block_until_ready(sketchmem_reference(query, category_idxs, params))
    np.testing.assert_allclose(np.asarray(out), np.asarray(ref), rtol=2e-3, atol=2e-3)

    # Exercise the batch-padding path (B not a multiple of the sublane tile).
    out5 = jax.block_until_ready(
        sketchmem_forward(query[:5], category_idxs[:5], params))
    ref5 = jax.block_until_ready(
        sketchmem_reference(query[:5], category_idxs[:5], params))
    np.testing.assert_allclose(np.asarray(out5), np.asarray(ref5), rtol=2e-3, atol=2e-3)

    print("KERNEL_OK")
</pallas_src>

<mosaic_0001>
module attributes {stable_mosaic.version = 11 : i64} {
  func.func @_sketchmem_kernel(%arg0: i32, %arg1: memref<8x32xf32, #tpu.memory_space<vmem>>, %arg2: memref<8x1xi32, #tpu.memory_space<vmem>>, %arg3: memref<1x384xi32, #tpu.memory_space<vmem>>, %arg4: memref<32x64xf32, #tpu.memory_space<vmem>>, %arg5: memref<1x64xf32, #tpu.memory_space<vmem>>, %arg6: memref<32x16xf32, #tpu.memory_space<vmem>>, %arg7: memref<16x32xf32, #tpu.memory_space<vmem>>, %arg8: memref<32x384xf32, #tpu.memory_space<vmem>>, %arg9: memref<384x32xf32, #tpu.memory_space<vmem>>, %arg10: memref<1x32xf32, #tpu.memory_space<vmem>>, %arg11: memref<8x32xf32, #tpu.memory_space<vmem>>) attributes {dimension_semantics = [#tpu.dimension_semantics<parallel>], iteration_bounds = array<i64: 1>, scalar_prefetch = 0 : i64, scratch_operands = 0 : i64, tpu.core_type = #tpu.core_type<tc>, window_params = [{transform_indices = @transform_0, window_bounds = array<i64: 8, 32>}, {transform_indices = @transform_1, window_bounds = array<i64: 8, 1>}, {pipeline_mode = #tpu.pipeline_mode<synchronous>, transform_indices = @transform_2, window_bounds = array<i64: 1, 384>}, {pipeline_mode = #tpu.pipeline_mode<synchronous>, transform_indices = @transform_3, window_bounds = array<i64: 32, 64>}, {pipeline_mode = #tpu.pipeline_mode<synchronous>, transform_indices = @transform_4, window_bounds = array<i64: 1, 64>}, {pipeline_mode = #tpu.pipeline_mode<synchronous>, transform_indices = @transform_5, window_bounds = array<i64: 32, 16>}, {pipeline_mode = #tpu.pipeline_mode<synchronous>, transform_indices = @transform_6, window_bounds = array<i64: 16, 32>}, {pipeline_mode = #tpu.pipeline_mode<synchronous>, transform_indices = @transform_7, window_bounds = array<i64: 32, 384>}, {pipeline_mode = #tpu.pipeline_mode<synchronous>, transform_indices = @transform_8, window_bounds = array<i64: 384, 32>}, {pipeline_mode = #tpu.pipeline_mode<synchronous>, transform_indices = @transform_9, window_bounds = array<i64: 1, 32>}, {transform_indices = @transform_10, window_bounds = array<i64: 8, 32>}]} {
    %c0 = arith.constant 0 : index
    %c0_0 = arith.constant 0 : index
    %0 = vector.load %arg1[%c0, %c0_0] : memref<8x32xf32, #tpu.memory_space<vmem>>, vector<8x32xf32>
    %c0_1 = arith.constant 0 : index
    %c0_2 = arith.constant 0 : index
    %1 = vector.load %arg4[%c0_1, %c0_2] : memref<32x64xf32, #tpu.memory_space<vmem>>, vector<32x64xf32>
    %cst = arith.constant dense<0.000000e+00> : vector<8x64xf32>
    %2 = tpu.matmul %0, %1, %cst {dimension_numbers = #tpu.dot_dimension_numbers<[1], [0], [0], [1], [0, 0, 1, 1], [], []>} : vector<8x32xf32>, vector<32x64xf32>, vector<8x64xf32> -> vector<8x64xf32>
    %c0_3 = arith.constant 0 : index
    %c0_4 = arith.constant 0 : index
    %3 = vector.load %arg5[%c0_3, %c0_4] : memref<1x64xf32, #tpu.memory_space<vmem>>, vector<1x64xf32>
    %4 = vector.broadcast %3 : vector<1x64xf32> to vector<8x64xf32>
    %5 = arith.addf %2, %4 : vector<8x64xf32>
    %6 = vector.extract_strided_slice %5 {offsets = [0, 0], sizes = [8, 32], strides = [1, 1]} : vector<8x64xf32> to vector<8x32xf32>
    %7 = vector.extract_strided_slice %5 {offsets = [0, 32], sizes = [8, 32], strides = [1, 1]} : vector<8x64xf32> to vector<8x32xf32>
    %8 = arith.mulf %6, %6 : vector<8x32xf32>
    %cst_5 = arith.constant dense<0.000000e+00> : vector<8xf32>
    %9 = vector.multi_reduction <add>, %8, %cst_5 [1] : vector<8x32xf32> to vector<8xf32>
    %10 = vector.shape_cast %9 : vector<8xf32> to vector<8x1xf32>
    %cst_6 = arith.constant 1.000000e-16 : f32
    %11 = vector.broadcast %cst_6 : f32 to vector<8x1xf32>
    %12 = arith.maximumf %10, %11 : vector<8x1xf32>
    %13 = math.rsqrt %12 : vector<8x1xf32>
    %14 = vector.broadcast %13 : vector<8x1xf32> to vector<8x32xf32>
    %15 = arith.mulf %6, %14 : vector<8x32xf32>
    %c0_7 = arith.constant 0 : index
    %c0_8 = arith.constant 0 : index
    %16 = vector.load %arg6[%c0_7, %c0_8] : memref<32x16xf32, #tpu.memory_space<vmem>>, vector<32x16xf32>
    %cst_9 = arith.constant dense<0.000000e+00> : vector<8x16xf32>
    %17 = tpu.matmul %15, %16, %cst_9 {dimension_numbers = #tpu.dot_dimension_numbers<[1], [0], [0], [1], [0, 0, 1, 1], [], []>} : vector<8x32xf32>, vector<32x16xf32>, vector<8x16xf32> -> vector<8x16xf32>
    %cst_10 = arith.constant dense<0xFF800000> : vector<8xf32>
    %18 = vector.multi_reduction <maximumf>, %17, %cst_10 [1] : vector<8x16xf32> to vector<8xf32>
    %19 = vector.shape_cast %18 : vector<8xf32> to vector<8x1xf32>
    %20 = vector.broadcast %19 : vector<8x1xf32> to vector<8x16xf32>
    %21 = arith.subf %17, %20 : vector<8x16xf32>
    %22 = math.exp %21 : vector<8x16xf32>
    %cst_11 = arith.constant dense<0.000000e+00> : vector<8xf32>
    %23 = vector.multi_reduction <add>, %22, %cst_11 [1] : vector<8x16xf32> to vector<8xf32>
    %24 = vector.shape_cast %23 : vector<8xf32> to vector<8x1xf32>
    %25 = tpu.reciprocal %24 {approx = true} : vector<8x1xf32> -> vector<8x1xf32>
    %26 = vector.broadcast %25 : vector<8x1xf32> to vector<8x16xf32>
    %27 = arith.mulf %22, %26 : vector<8x16xf32>
    %c0_12 = arith.constant 0 : index
    %c0_13 = arith.constant 0 : index
    %28 = vector.load %arg8[%c0_12, %c0_13] : memref<32x384xf32, #tpu.memory_space<vmem>>, vector<32x384xf32>
    %cst_14 = arith.constant dense<0.000000e+00> : vector<8x384xf32>
    %29 = tpu.matmul %7, %28, %cst_14 {dimension_numbers = #tpu.dot_dimension_numbers<[1], [0], [0], [1], [0, 0, 1, 1], [], []>} : vector<8x32xf32>, vector<32x384xf32>, vector<8x384xf32> -> vector<8x384xf32>
    %c0_15 = arith.constant 0 : index
    %c0_16 = arith.constant 0 : index
    %30 = vector.load %arg3[%c0_15, %c0_16] : memref<1x384xi32, #tpu.memory_space<vmem>>, vector<1x384xi32>
    %c0_17 = arith.constant 0 : index
    %c0_18 = arith.constant 0 : index
    %31 = vector.load %arg2[%c0_17, %c0_18] : memref<8x1xi32, #tpu.memory_space<vmem>>, vector<8x1xi32>
    %32 = vector.broadcast %30 : vector<1x384xi32> to vector<8x384xi32>
    %33 = vector.broadcast %31 : vector<8x1xi32> to vector<8x384xi32>
    %34 = arith.cmpi eq, %32, %33 : vector<8x384xi32>
    %cst_19 = arith.constant -1.000000e+30 : f32
    %35 = vector.broadcast %cst_19 : f32 to vector<8x384xf32>
    %36 = arith.select %34, %29, %35 : vector<8x384xi1>, vector<8x384xf32>
    %cst_20 = arith.constant dense<0xFF800000> : vector<8xf32>
    %37 = vector.multi_reduction <maximumf>, %36, %cst_20 [1] : vector<8x384xf32> to vector<8xf32>
    %38 = vector.shape_cast %37 : vector<8xf32> to vector<8x1xf32>
    %39 = vector.broadcast %38 : vector<8x1xf32> to vector<8x384xf32>
    %40 = arith.subf %36, %39 : vector<8x384xf32>
    %41 = math.exp %40 : vector<8x384xf32>
    %cst_21 = arith.constant dense<0.000000e+00> : vector<8xf32>
    %42 = vector.multi_reduction <add>, %41, %cst_21 [1] : vector<8x384xf32> to vector<8xf32>
    %43 = vector.shape_cast %42 : vector<8xf32> to vector<8x1xf32>
    %44 = tpu.reciprocal %43 {approx = true} : vector<8x1xf32> -> vector<8x1xf32>
    %45 = vector.broadcast %44 : vector<8x1xf32> to vector<8x384xf32>
    %46 = arith.mulf %41, %45 : vector<8x384xf32>
    %c0_22 = arith.constant 0 : index
    %c0_23 = arith.constant 0 : index
    %47 = vector.load %arg7[%c0_22, %c0_23] : memref<16x32xf32, #tpu.memory_space<vmem>>, vector<16x32xf32>
    %cst_24 = arith.constant dense<0.000000e+00> : vector<8x32xf32>
    %48 = tpu.matmul %27, %47, %cst_24 {dimension_numbers = #tpu.dot_dimension_numbers<[1], [0], [0], [1], [0, 0, 1, 1], [], []>} : vector<8x16xf32>, vector<16x32xf32>, vector<8x32xf32> -> vector<8x32xf32>
    %c0_25 = arith.constant 0 : index
    %c0_26 = arith.constant 0 : index
    %49 = vector.load %arg9[%c0_25, %c0_26] : memref<384x32xf32, #tpu.memory_space<vmem>>, vector<384x32xf32>
    %cst_27 = arith.constant dense<0.000000e+00> : vector<8x32xf32>
    %50 = tpu.matmul %46, %49, %cst_27 {dimension_numbers = #tpu.dot_dimension_numbers<[1], [0], [0], [1], [0, 0, 1, 1], [], []>} : vector<8x384xf32>, vector<384x32xf32>, vector<8x32xf32> -> vector<8x32xf32>
    %51 = arith.addf %48, %50 : vector<8x32xf32>
    %c0_28 = arith.constant 0 : index
    %c0_29 = arith.constant 0 : index
    %52 = vector.load %arg10[%c0_28, %c0_29] : memref<1x32xf32, #tpu.memory_space<vmem>>, vector<1x32xf32>
    %53 = vector.broadcast %52 : vector<1x32xf32> to vector<8x32xf32>
    %54 = arith.addf %51, %53 : vector<8x32xf32>
    %c0_30 = arith.constant 0 : index
    %c0_31 = arith.constant 0 : index
    %55 = vector.load %arg11[%c0_30, %c0_31] : memref<8x32xf32, #tpu.memory_space<vmem>>, vector<8x32xf32>
    tpu.vector_store %arg11[%c0_30, %c0_31], %54 {strides = array<i32>} : memref<8x32xf32, #tpu.memory_space<vmem>>, vector<8x32xf32>,
    return
  }
  func.func @transform_0(%arg0: i32) -> (i32, i32) {
    %c0_i32 = arith.constant 0 : i32
    %c0_i32_0 = arith.constant 0 : i32
    return %arg0, %c0_i32 : i32, i32
  }
  func.func @transform_1(%arg0: i32) -> (i32, i32) {
    %c0_i32 = arith.constant 0 : i32
    %c0_i32_0 = arith.constant 0 : i32
    return %arg0, %c0_i32 : i32, i32
  }
  func.func @transform_2(%arg0: i32) -> (i32, i32) {
    %c0_i32 = arith.constant 0 : i32
    %c0_i32_0 = arith.constant 0 : i32
    %c0_i32_1 = arith.constant 0 : i32
    return %c0_i32, %c0_i32_0 : i32, i32
  }
  func.func @transform_3(%arg0: i32) -> (i32, i32) {
    %c0_i32 = arith.constant 0 : i32
    %c0_i32_0 = arith.constant 0 : i32
    %c0_i32_1 = arith.constant 0 : i32
    return %c0_i32, %c0_i32_0 : i32, i32
  }
  func.func @transform_4(%arg0: i32) -> (i32, i32) {
    %c0_i32 = arith.constant 0 : i32
    %c0_i32_0 = arith.constant 0 : i32
    %c0_i32_1 = arith.constant 0 : i32
    return %c0_i32, %c0_i32_0 : i32, i32
  }
  func.func @transform_5(%arg0: i32) -> (i32, i32) {
    %c0_i32 = arith.constant 0 : i32
    %c0_i32_0 = arith.constant 0 : i32
    %c0_i32_1 = arith.constant 0 : i32
    return %c0_i32, %c0_i32_0 : i32, i32
  }
  func.func @transform_6(%arg0: i32) -> (i32, i32) {
    %c0_i32 = arith.constant 0 : i32
    %c0_i32_0 = arith.constant 0 : i32
    %c0_i32_1 = arith.constant 0 : i32
    return %c0_i32, %c0_i32_0 : i32, i32
  }
  func.func @transform_7(%arg0: i32) -> (i32, i32) {
    %c0_i32 = arith.constant 0 : i32
    %c0_i32_0 = arith.constant 0 : i32
    %c0_i32_1 = arith.constant 0 : i32
    return %c0_i32, %c0_i32_0 : i32, i32
  }
  func.func @transform_8(%arg0: i32) -> (i32, i32) {
    %c0_i32 = arith.constant 0 : i32
    %c0_i32_0 = arith.constant 0 : i32
    %c0_i32_1 = arith.constant 0 : i32
    return %c0_i32, %c0_i32_0 : i32, i32
  }
  func.func @transform_9(%arg0: i32) -> (i32, i32) {
    %c0_i32 = arith.constant 0 : i32
    %c0_i32_0 = arith.constant 0 : i32
    %c0_i32_1 = arith.constant 0 : i32
    return %c0_i32, %c0_i32_0 : i32, i32
  }
  func.func @transform_10(%arg0: i32) -> (i32, i32) {
    %c0_i32 = arith.constant 0 : i32
    %c0_i32_0 = arith.constant 0 : i32
    return %arg0, %c0_i32 : i32, i32
  }
}

</mosaic_0001>

<llo_original>
// kernel: tpu_custom_call.1
$region0: #{tpu_custom_call.1}
  #allocation0 [shape = 'u32[]', space=smem, size = 0x4, offset = 0x4, fixed_abs, tag = 'smem constant byte address 0x4 - core index']
  #allocation1 [shape = 'u32[144,128]{1,0:T(1,128)}', space=vmem, size = 0x12000, scoped, tag = 'internal scratch']
  %s0 = inlined_call_operand.vmem [shape: f32[8,32], index: 0, kind: input, shape index: {}]
  %s1 = inlined_call_operand.vmem [shape: s32[8,1], index: 1, kind: input, shape index: {}]
  %s2 = inlined_call_operand.vmem [shape: s32[1,384], index: 2, kind: input, shape index: {}]
  %s3 = inlined_call_operand.vmem [shape: f32[32,64], index: 3, kind: input, shape index: {}]
  %s4 = inlined_call_operand.vmem [shape: f32[1,64], index: 4, kind: input, shape index: {}]
  %s5 = inlined_call_operand.vmem [shape: f32[32,16], index: 5, kind: input, shape index: {}]
  %s6 = inlined_call_operand.vmem [shape: f32[16,32], index: 6, kind: input, shape index: {}]
  %s7 = inlined_call_operand.vmem [shape: f32[32,384], index: 7, kind: input, shape index: {}]
  %s8 = inlined_call_operand.vmem [shape: f32[384,32], index: 8, kind: input, shape index: {}]
  %s9 = inlined_call_operand.vmem [shape: f32[1,32], index: 9, kind: input, shape index: {}]
  %s10 = inlined_call_operand.hbm [shape: f32[8,32], index: 10, kind: output, shape index: {}]
  %s11 = sld [smem:[#allocation0]]
  $region50: #{tpu_custom_call.1} parent=0
    _
  %s13 = ssub.s32 1, %s11
  %s14 = scalar_select 0, %s13, %s11
  $region1: #{tpu_custom_call.1} parent=0
    #allocation2 [shape = 'u8[4096]{0}', space=vmem, size = 0x1000, scoped, tag = 'output window, operand 0, single buffered']
    #allocation3 [shape = 's32[1]{0}', space=sflag, size = 0x4, scoped, tag = 'scoped memory for tpu_custom_call.1']
    %15 = vsyncpa [#allocation3], 0
    // Predicated region
    $region2: #{tpu_custom_call.1} parent=1 // pred_check
      _
    $region3: #{tpu_custom_call.1} parent=1 // pred_check_branch
      %17 = sbr.rel (0) target = $region5
    $region4: #{tpu_custom_call.1} parent=1 // pred_region
      _
    $region5: #{tpu_custom_call.1} parent=1 // pred_fallthru
      _
    // Predicated region
    $region6: #{tpu_custom_call.1} parent=1 // pred_check
      _
    $region7: #{tpu_custom_call.1} parent=1 // pred_check_branch
      %19 = sbr.rel (0) target = $region9
    $region8: #{tpu_custom_call.1} parent=1 // pred_region
      _
    $region9: #{tpu_custom_call.1} parent=1 // pred_fallthru
      _
    // Predicated region
    $region10: #{tpu_custom_call.1} parent=1 // pred_check
      _
    $region11: #{tpu_custom_call.1} parent=1 // pred_check_branch
      %21 = sbr.rel (0) target = $region13
    $region12: #{tpu_custom_call.1} parent=1 // pred_region
      _
    $region13: #{tpu_custom_call.1} parent=1 // pred_fallthru
      _
    // Predicated region
    $region14: #{tpu_custom_call.1} parent=1 // pred_check
      _
    $region15: #{tpu_custom_call.1} parent=1 // pred_check_branch
      %23 = sbr.rel (0) target = $region17
    $region16: #{tpu_custom_call.1} parent=1 // pred_region
      _
    $region17: #{tpu_custom_call.1} parent=1 // pred_fallthru
      _
    // Predicated region
    $region18: #{tpu_custom_call.1} parent=1 // pred_check
      _
    $region19: #{tpu_custom_call.1} parent=1 // pred_check_branch
      %25 = sbr.rel (0) target = $region21
    $region20: #{tpu_custom_call.1} parent=1 // pred_region
      _
    $region21: #{tpu_custom_call.1} parent=1 // pred_fallthru
      _
    // Predicated region
    $region22: #{tpu_custom_call.1} parent=1 // pred_check
      _
    $region23: #{tpu_custom_call.1} parent=1 // pred_check_branch
      %27 = sbr.rel (0) target = $region25
    $region24: #{tpu_custom_call.1} parent=1 // pred_region
      _
    $region25: #{tpu_custom_call.1} parent=1 // pred_fallthru
      _
    // Predicated region
    $region26: #{tpu_custom_call.1} parent=1 // pred_check
      _
    $region27: #{tpu_custom_call.1} parent=1 // pred_check_branch
      %29 = sbr.rel (0) target = $region29
    $region28: #{tpu_custom_call.1} parent=1 // pred_region
      _
    $region29: #{tpu_custom_call.1} parent=1 // pred_fallthru
      _
    // Predicated region
    $region30: #{tpu_custom_call.1} parent=1 // pred_check
      _
    $region31: #{tpu_custom_call.1} parent=1 // pred_check_branch
      %31 = sbr.rel (0) target = $region33
    $region32: #{tpu_custom_call.1} parent=1 // pred_region
      _
    $region33: #{tpu_custom_call.1} parent=1 // pred_fallthru
      _
    // Predicated region
    $region34: #{tpu_custom_call.1} parent=1 // pred_check
      _
    $region35: #{tpu_custom_call.1} parent=1 // pred_check_branch
      %33 = sbr.rel (0) target = $region37
    $region36: #{tpu_custom_call.1} parent=1 // pred_region
      _
    $region37: #{tpu_custom_call.1} parent=1 // pred_fallthru
      _
    // Predicated region
    $region38: #{tpu_custom_call.1} parent=1 // pred_check
      _
    $region39: #{tpu_custom_call.1} parent=1 // pred_check_branch
      %35 = sbr.rel (0) target = $region41
    $region40: #{tpu_custom_call.1} parent=1 // pred_region
      _
    $region41: #{tpu_custom_call.1} parent=1 // pred_fallthru
      _
    %v36 = vld [vmem:[%s0] sm:$0xff]
    %v37 = vld [vmem:[%s3] sm:$0xff]
    %v38 = vld [vmem:[%s3 + $0x8] sm:$0xff]
    %v39 = vld [vmem:[%s3 + $0x10] sm:$0xff]
    %v40 = vld [vmem:[%s3 + $0x18] sm:$0xff]
    %v41 = vld [vmem:[%s4] sm:$0x1]
    %v43 = vlaneseq
    %v44 = vshrl.u32 %v43, 7
    %v45 = vsub.s32 0, %v44
    %v46 = vrot.slane %v41, %v45
    %vm48 = vcmask 261120
    %v50 = vsel %vm48, %v36, 0
    %52 = vmatprep.subr.mxu0 0.0
    %53 = vmatpush1.msra.mxu0 %v37
    %54 = vmatprep.subr.mxu0 0.0
    %55 = vmatpush1.msra.mxu0 %v38
    %56 = vmatprep.subr.mxu0 0.0
    %57 = vmatpush1.msra.mxu0 %v39
    %58 = vmatprep.subr.mxu0 0.0
    %59 = vmatpush1.msra.mxu0 %v40
    %60 = vmatprep.subr.mxu0 0.0
    %61 = vmatpush1.msra.mxu0 0.0
    %62 = vmatprep.subr.mxu0 0.0
    %63 = vmatpush1.msra.mxu0 0.0
    %64 = vmatprep.subr.mxu0 0.0
    %65 = vmatpush1.msra.mxu0 0.0
    %66 = vmatprep.subr.mxu0 0.0
    %67 = vmatpush1.msra.mxu0 0.0
    %68 = vmatprep.subr.mxu0 0.0
    %69 = vmatpush1.msra.mxu0 0.0
    %70 = vmatprep.subr.mxu0 0.0
    %71 = vmatpush1.msra.mxu0 0.0
    %72 = vmatprep.subr.mxu0 0.0
    %73 = vmatpush1.msra.mxu0 0.0
    %74 = vmatprep.subr.mxu0 0.0
    %75 = vmatpush1.msra.mxu0 0.0
    %76 = vmatprep.subr.mxu0 0.0
    %77 = vmatpush1.msra.mxu0 0.0
    %78 = vmatprep.subr.mxu0 0.0
    %79 = vmatpush1.msra.mxu0 0.0
    %80 = vmatprep.subr.mxu0 0.0
    %81 = vmatpush1.msra.mxu0 0.0
    %82 = vmatprep.subr.mxu0 0.0
    %83 = vmatpush1.msra.mxu0 0.0
    %84 = vmatprep.subr.mxu0 0.0
    %85 = vmatpush1.msra.mxu0 0.0
    %86 = vmatprep.subr.mxu0 0.0
    %87 = vmatpush1.msra.mxu0 0.0
    %88 = vmatprep.subr.mxu0 0.0
    %89 = vmatpush1.msra.mxu0 0.0
    %90 = vmatprep.subr.mxu0 0.0
    %91 = vmatpush1.msra.mxu0 0.0
    %92 = vmatprep.subr.mxu0 0.0
    %93 = vmatpush1.msra.mxu0 0.0
    %94 = vmatprep.subr.mxu0 0.0
    %95 = vmatpush1.msra.mxu0 0.0
    %96 = vmatprep.subr.mxu0 0.0
    %97 = vmatpush1.msra.mxu0 0.0
    %98 = vmatprep.subr.mxu0 0.0
    %99 = vmatpush1.msra.mxu0 0.0
    %100 = vmatprep.subr.mxu0 0.0
    %101 = vmatpush1.msra.mxu0 0.0
    %102 = vmatprep.subr.mxu0 0.0
    %103 = vmatpush1.msra.mxu0 0.0
    %104 = vmatprep.subr.mxu0 0.0
    %105 = vmatpush1.msra.mxu0 0.0
    %106 = vmatprep.subr.mxu0 0.0
    %107 = vmatpush1.msra.mxu0 0.0
    %108 = vmatprep.subr.mxu0 0.0
    %109 = vmatpush1.msra.mxu0 0.0
    %110 = vmatprep.subr.mxu0 0.0
    %111 = vmatpush1.msra.mxu0 0.0
    %112 = vmatprep.subr.mxu0 0.0
    %113 = vmatpush1.msra.mxu0 0.0
    %114 = vmatprep.subr.mxu0 0.0
    %115 = vmatpush1.msra.mxu0 0.0
    %116 = vmatprep.mubr.f32.mxu0 0.0
    %117 = vmatmul.mubr.f32.gmra.mrb[0].mxu0 %v50
    %v118 = vpop.f32.mrb[0].mxu0
    %v119 = vadd.f32 %v46, %v118
    %v120 = vpop.f32.mrb[0].mxu0
    %121 = vdwg.mxu0
    %v122 = vmul.f32 %v119, %v119
    %v123 = vsel %vm48, %v122, 0.0
    %124 = vadd.xlane.f32.xlu0 %v123
    %v125 = vpop.xlane.xlu0 %124
    %v126 = vmax.f32 %v125, 1e-16
    %v127 = vrsqrt.pop %v126
    %v128 = vmul.f32 %v119, %v127
    %v129 = vld [vmem:[%s5] sm:$0xff]
    %v130 = vld [vmem:[%s5 + $0x8] sm:$0xff]
    %v131 = vld [vmem:[%s5 + $0x10] sm:$0xff]
    %v132 = vld [vmem:[%s5 + $0x18] sm:$0xff]
    %v134 = vsel %vm48, %v128, 0
    %136 = vmatprep.subr.mxu0 0.0
    %137 = vmatpush1.msra.mxu0 %v129
    %138 = vmatprep.subr.mxu0 0.0
    %139 = vmatpush1.msra.mxu0 %v130
    %140 = vmatprep.subr.mxu0 0.0
    %141 = vmatpush1.msra.mxu0 %v131
    %142 = vmatprep.subr.mxu0 0.0
    %143 = vmatpush1.msra.mxu0 %v132
    %144 = vmatprep.subr.mxu0 0.0
    %145 = vmatpush1.msra.mxu0 0.0
    %146 = vmatprep.subr.mxu0 0.0
    %147 = vmatpush1.msra.mxu0 0.0
    %148 = vmatprep.subr.mxu0 0.0
    %149 = vmatpush1.msra.mxu0 0.0
    %150 = vmatprep.subr.mxu0 0.0
    %151 = vmatpush1.msra.mxu0 0.0
    %152 = vmatprep.subr.mxu0 0.0
    %153 = vmatpush1.msra.mxu0 0.0
    %154 = vmatprep.subr.mxu0 0.0
    %155 = vmatpush1.msra.mxu0 0.0
    %156 = vmatprep.subr.mxu0 0.0
    %157 = vmatpush1.msra.mxu0 0.0
    %158 = vmatprep.subr.mxu0 0.0
    %159 = vmatpush1.msra.mxu0 0.0
    %160 = vmatprep.subr.mxu0 0.0
    %161 = vmatpush1.msra.mxu0 0.0
    %162 = vmatprep.subr.mxu0 0.0
    %163 = vmatpush1.msra.mxu0 0.0
    %164 = vmatprep.subr.mxu0 0.0
    %165 = vmatpush1.msra.mxu0 0.0
    %166 = vmatprep.subr.mxu0 0.0
    %167 = vmatpush1.msra.mxu0 0.0
    %168 = vmatprep.subr.mxu0 0.0
    %169 = vmatpush1.msra.mxu0 0.0
    %170 = vmatprep.subr.mxu0 0.0
    %171 = vmatpush1.msra.mxu0 0.0
    %172 = vmatprep.subr.mxu0 0.0
    %173 = vmatpush1.msra.mxu0 0.0
    %174 = vmatprep.subr.mxu0 0.0
    %175 = vmatpush1.msra.mxu0 0.0
    %176 = vmatprep.subr.mxu0 0.0
    %177 = vmatpush1.msra.mxu0 0.0
    %178 = vmatprep.subr.mxu0 0.0
    %179 = vmatpush1.msra.mxu0 0.0
    %180 = vmatprep.subr.mxu0 0.0
    %181 = vmatpush1.msra.mxu0 0.0
    %182 = vmatprep.subr.mxu0 0.0
    %183 = vmatpush1.msra.mxu0 0.0
    %184 = vmatprep.subr.mxu0 0.0
    %185 = vmatpush1.msra.mxu0 0.0
    %186 = vmatprep.subr.mxu0 0.0
    %187 = vmatpush1.msra.mxu0 0.0
    %188 = vmatprep.subr.mxu0 0.0
    %189 = vmatpush1.msra.mxu0 0.0
    %190 = vmatprep.subr.mxu0 0.0
    %191 = vmatpush1.msra.mxu0 0.0
    %192 = vmatprep.subr.mxu0 0.0
    %193 = vmatpush1.msra.mxu0 0.0
    %194 = vmatprep.subr.mxu0 0.0
    %195 = vmatpush1.msra.mxu0 0.0
    %196 = vmatprep.subr.mxu0 0.0
    %197 = vmatpush1.msra.mxu0 0.0
    %198 = vmatprep.subr.mxu0 0.0
    %199 = vmatpush1.msra.mxu0 0.0
    %200 = vmatprep.mubr.f32.mxu0 0.0
    %201 = vmatmul.mubr.f32.gmra.mrb[0].mxu0 %v134
    %v202 = vpop.f32.mrb[0].mxu0
    %v203 = vadd.f32 0.0, %v202
    %v204 = vpop.f32.mrb[0].mxu0
    %205 = vdwg.mxu0
    %vm206 = vcmask 130048
    %v207 = vsel %vm206, %v203, -inf
    %208 = vmax.xlane.f32.xlu0 %v207
    %v209 = vpop.xlane.xlu0 %208
    %v210 = vsub.f32 %v203, %v209
    %v211 = vmul.f32 %v210, 1.442695
    %v212 = vpow.pop %v211
    %v213 = vsel %vm206, %v212, 0.0
    %214 = vadd.xlane.f32.xlu0 %v213
    %v215 = vpop.xlane.xlu0 %214
    %v216 = vrcp.pop %v215
    %v217 = vmul.f32 %v212, %v216
    %v218 = vld [vmem:[%s7] sm:$0xff]
    %v219 = vld [vmem:[%s7 + $0x8] sm:$0xff]
    %v220 = vld [vmem:[%s7 + $0x10] sm:$0xff]
    %v221 = vld [vmem:[%s7 + $0x18] sm:$0xff]
    %v222 = vld [vmem:[%s7 + $0x20] sm:$0xff]
    %v223 = vld [vmem:[%s7 + $0x28] sm:$0xff]
    %v224 = vld [vmem:[%s7 + $0x30] sm:$0xff]
    %v225 = vld [vmem:[%s7 + $0x38] sm:$0xff]
    %v226 = vld [vmem:[%s7 + $0x40] sm:$0xff]
    %v227 = vld [vmem:[%s7 + $0x48] sm:$0xff]
    %v228 = vld [vmem:[%s7 + $0x50] sm:$0xff]
    %v229 = vld [vmem:[%s7 + $0x58] sm:$0xff]
    %231 = vrot.lane.b32.xlu0 %v119, 96
    %v232 = vpop.permute.xlu0 %231
    %v233 = vsel %vm48, %v232, 0
    %235 = vmatprep.subr.mxu0 %v219
    %236 = vmatpush1.msra.mxu0 %v218
    %237 = vmatprep.subr.mxu0 %v222
    %238 = vmatpush1.msra.mxu0 %v221
    %239 = vmatprep.subr.mxu0 %v225
    %240 = vmatpush1.msra.mxu0 %v224
    %241 = vmatprep.subr.mxu0 %v228
    %242 = vmatpush1.msra.mxu0 %v227
    %243 = vmatprep.subr.mxu0 0.0
    %244 = vmatpush1.msra.mxu0 0.0
    %245 = vmatprep.subr.mxu0 0.0
    %246 = vmatpush1.msra.mxu0 0.0
    %247 = vmatprep.subr.mxu0 0.0
    %248 = vmatpush1.msra.mxu0 0.0
    %249 = vmatprep.subr.mxu0 0.0
    %250 = vmatpush1.msra.mxu0 0.0
    %251 = vmatprep.subr.mxu0 0.0
    %252 = vmatpush1.msra.mxu0 0.0
    %253 = vmatprep.subr.mxu0 0.0
    %254 = vmatpush1.msra.mxu0 0.0
    %255 = vmatprep.subr.mxu0 0.0
    %256 = vmatpush1.msra.mxu0 0.0
    %257 = vmatprep.subr.mxu0 0.0
    %258 = vmatpush1.msra.mxu0 0.0
    %259 = vmatprep.subr.mxu0 0.0
    %260 = vmatpush1.msra.mxu0 0.0
    %261 = vmatprep.subr.mxu0 0.0
    %262 = vmatpush1.msra.mxu0 0.0
    %263 = vmatprep.subr.mxu0 0.0
    %264 = vmatpush1.msra.mxu0 0.0
    %265 = vmatprep.subr.mxu0 0.0
    %266 = vmatpush1.msra.mxu0 0.0
    %267 = vmatprep.subr.mxu0 0.0
    %268 = vmatpush1.msra.mxu0 0.0
    %269 = vmatprep.subr.mxu0 0.0
    %270 = vmatpush1.msra.mxu0 0.0
    %271 = vmatprep.subr.mxu0 0.0
    %272 = vmatpush1.msra.mxu0 0.0
    %273 = vmatprep.subr.mxu0 0.0
    %274 = vmatpush1.msra.mxu0 0.0
    %275 = vmatprep.subr.mxu0 0.0
    %276 = vmatpush1.msra.mxu0 0.0
    %277 = vmatprep.subr.mxu0 0.0
    %278 = vmatpush1.msra.mxu0 0.0
    %279 = vmatprep.subr.mxu0 0.0
    %280 = vmatpush1.msra.mxu0 0.0
    %281 = vmatprep.subr.mxu0 0.0
    %282 = vmatpush1.msra.mxu0 0.0
    %283 = vmatprep.subr.mxu0 0.0
    %284 = vmatpush1.msra.mxu0 0.0
    %285 = vmatprep.subr.mxu0 0.0
    %286 = vmatpush1.msra.mxu0 0.0
    %287 = vmatprep.subr.mxu0 0.0
    %288 = vmatpush1.msra.mxu0 0.0
    %289 = vmatprep.subr.mxu0 0.0
    %290 = vmatpush1.msra.mxu0 0.0
    %291 = vmatprep.subr.mxu0 0.0
    %292 = vmatpush1.msra.mxu0 0.0
    %293 = vmatprep.subr.mxu0 0.0
    %294 = vmatpush1.msra.mxu0 0.0
    %295 = vmatprep.subr.mxu0 0.0
    %296 = vmatpush1.msra.mxu0 0.0
    %297 = vmatprep.subr.mxu0 0.0
    %298 = vmatpush1.msra.mxu0 0.0
    %299 = vmatprep.mubr.f32.mxu0 0.0
    %300 = vmatmul.mubr.f32.gmra.mrb[0].mxu0 %v233
    %v301 = vpop.f32.mrb[0].mxu0
    %v302 = vadd.f32 0.0, %v301
    %v303 = vpop.f32.mrb[0].mxu0
    %v304 = vadd.f32 0.0, %v303
    %305 = vdwg.mxu0
    %306 = vmatprep.subr.mxu0 0.0
    %307 = vmatpush1.msra.mxu0 %v220
    %308 = vmatprep.subr.mxu0 0.0
    %309 = vmatpush1.msra.mxu0 %v223
    %310 = vmatprep.subr.mxu0 0.0
    %311 = vmatpush1.msra.mxu0 %v226
    %312 = vmatprep.subr.mxu0 0.0
    %313 = vmatpush1.msra.mxu0 %v229
    %314 = vmatprep.subr.mxu0 0.0
    %315 = vmatpush1.msra.mxu0 0.0
    %316 = vmatprep.subr.mxu0 0.0
    %317 = vmatpush1.msra.mxu0 0.0
    %318 = vmatprep.subr.mxu0 0.0
    %319 = vmatpush1.msra.mxu0 0.0
    %320 = vmatprep.subr.mxu0 0.0
    %321 = vmatpush1.msra.mxu0 0.0
    %322 = vmatprep.subr.mxu0 0.0
    %323 = vmatpush1.msra.mxu0 0.0
    %324 = vmatprep.subr.mxu0 0.0
    %325 = vmatpush1.msra.mxu0 0.0
    %326 = vmatprep.subr.mxu0 0.0
    %327 = vmatpush1.msra.mxu0 0.0
    %328 = vmatprep.subr.mxu0 0.0
    %329 = vmatpush1.msra.mxu0 0.0
    %330 = vmatprep.subr.mxu0 0.0
    %331 = vmatpush1.msra.mxu0 0.0
    %332 = vmatprep.subr.mxu0 0.0
    %333 = vmatpush1.msra.mxu0 0.0
    %334 = vmatprep.subr.mxu0 0.0
    %335 = vmatpush1.msra.mxu0 0.0
    %336 = vmatprep.subr.mxu0 0.0
    %337 = vmatpush1.msra.mxu0 0.0
    %338 = vmatprep.subr.mxu0 0.0
    %339 = vmatpush1.msra.mxu0 0.0
    %340 = vmatprep.subr.mxu0 0.0
    %341 = vmatpush1.msra.mxu0 0.0
    %342 = vmatprep.subr.mxu0 0.0
    %343 = vmatpush1.msra.mxu0 0.0
    %344 = vmatprep.subr.mxu0 0.0
    %345 = vmatpush1.msra.mxu0 0.0
    %346 = vmatprep.subr.mxu0 0.0
    %347 = vmatpush1.msra.mxu0 0.0
    %348 = vmatprep.subr.mxu0 0.0
    %349 = vmatpush1.msra.mxu0 0.0
    %350 = vmatprep.subr.mxu0 0.0
    %351 = vmatpush1.msra.mxu0 0.0
    %352 = vmatprep.subr.mxu0 0.0
    %353 = vmatpush1.msra.mxu0 0.0
    %354 = vmatprep.subr.mxu0 0.0
    %355 = vmatpush1.msra.mxu0 0.0
    %356 = vmatprep.subr.mxu0 0.0
    %357 = vmatpush1.msra.mxu0 0.0
    %358 = vmatprep.subr.mxu0 0.0
    %359 = vmatpush1.msra.mxu0 0.0
    %360 = vmatprep.subr.mxu0 0.0
    %361 = vmatpush1.msra.mxu0 0.0
    %362 = vmatprep.subr.mxu0 0.0
    %363 = vmatpush1.msra.mxu0 0.0
    %364 = vmatprep.subr.mxu0 0.0
    %365 = vmatpush1.msra.mxu0 0.0
    %366 = vmatprep.subr.mxu0 0.0
    %367 = vmatpush1.msra.mxu0 0.0
    %368 = vmatprep.subr.mxu0 0.0
    %369 = vmatpush1.msra.mxu0 0.0
    %370 = vmatprep.mubr.f32.mxu0 0.0
    %371 = vmatmul.mubr.f32.gmra.mrb[0].mxu0 %v233
    %v372 = vpop.f32.mrb[0].mxu0
    %v373 = vadd.f32 0.0, %v372
    %v374 = vpop.f32.mrb[0].mxu0
    %375 = vdwg.mxu0
    %v376 = vld [vmem:[%s2] sm:$0x7]
    %v377 = vld [vmem:[%s1] sm:$0xff]
    %v378 = vlaneseq
    %v379 = vshrl.u32 %v378, 7
    %v380 = vsub.s32 0, %v379
    %v381 = vrot.slane %v376, %v380
    %v382 = vlaneseq
    %v383 = vshrl.u32 %v382, 7
    %v384 = vsub.s32 1, %v383
    %v385 = vrot.slane %v376, %v384
    %v386 = vlaneseq
    %v387 = vshrl.u32 %v386, 7
    %v388 = vsub.s32 2, %v387
    %v389 = vrot.slane %v376, %v388
    %390 = vset.pattern.permute.xlu0 0
    %391 = vperm.xlu0 %390, %v377
    %v392 = vpop.permute.xlu0 %391
    %vm393 = vcmp.eq.s32.totalorder %v381, %v392
    %vm394 = vcmp.eq.s32.totalorder %v385, %v392
    %vm395 = vcmp.eq.s32.totalorder %v389, %v392
    %v396 = vsel %vm393, %v302, -1e+30
    %v397 = vsel %vm394, %v304, -1e+30
    %v398 = vsel %vm395, %v373, -1e+30
    %v399 = vmax.f32 %v396, %v397
    %v400 = vmax.f32 %v399, %v398
    %401 = vmax.xlane.f32.xlu0 %v400
    %v402 = vpop.xlane.xlu0 %401
    %v403 = vsub.f32 %v396, %v402
    %v404 = vsub.f32 %v397, %v402
    %v405 = vsub.f32 %v398, %v402
    %v406 = vmul.f32 %v403, 1.442695
    %v407 = vpow.pop %v406
    %v408 = vmul.f32 %v404, 1.442695
    %v409 = vpow.pop %v408
    %v410 = vmul.f32 %v405, 1.442695
    %v411 = vpow.pop %v410
    %v412 = vadd.f32 %v407, %v409
    %v413 = vadd.f32 %v412, %v411
    %414 = vadd.xlane.f32.xlu0 %v413
    %v415 = vpop.xlane.xlu0 %414
    %v416 = vrcp.pop %v415
    %v417 = vmul.f32 %v407, %v416
    %v418 = vmul.f32 %v409, %v416
    %v419 = vmul.f32 %v411, %v416
    %v420 = vld [vmem:[%s6] sm:$0xff]
    %v421 = vld [vmem:[%s6 + $0x8] sm:$0xff]
    %v422 = vld [vmem:[%s8] sm:$0xff]
    %v423 = vld [vmem:[%s8 + $0x8] sm:$0xff]
    %v424 = vld [vmem:[%s8 + $0x10] sm:$0xff]
    %v425 = vld [vmem:[%s8 + $0x18] sm:$0xff]
    %v426 = vld [vmem:[%s8 + $0x20] sm:$0xff]
    %v427 = vld [vmem:[%s8 + $0x28] sm:$0xff]
    %v428 = vld [vmem:[%s8 + $0x30] sm:$0xff]
    %v429 = vld [vmem:[%s8 + $0x38] sm:$0xff]
    %v430 = vld [vmem:[%s8 + $0x40] sm:$0xff]
    %v431 = vld [vmem:[%s8 + $0x48] sm:$0xff]
    %v432 = vld [vmem:[%s8 + $0x50] sm:$0xff]
    %v433 = vld [vmem:[%s8 + $0x58] sm:$0xff]
    %v434 = vld [vmem:[%s8 + $0x60] sm:$0xff]
    %v435 = vld [vmem:[%s8 + $0x68] sm:$0xff]
    %v436 = vld [vmem:[%s8 + $0x70] sm:$0xff]
    %v437 = vld [vmem:[%s8 + $0x78] sm:$0xff]
    %v438 = vld [vmem:[%s8 + $0x80] sm:$0xff]
    %v439 = vld [vmem:[%s8 + $0x88] sm:$0xff]
    %v440 = vld [vmem:[%s8 + $0x90] sm:$0xff]
    %v441 = vld [vmem:[%s8 + $0x98] sm:$0xff]
    %v442 = vld [vmem:[%s8 + $0xa0] sm:$0xff]
    %v443 = vld [vmem:[%s8 + $0xa8] sm:$0xff]
    %v444 = vld [vmem:[%s8 + $0xb0] sm:$0xff]
    %v445 = vld [vmem:[%s8 + $0xb8] sm:$0xff]
    %v446 = vld [vmem:[%s8 + $0xc0] sm:$0xff]
    %v447 = vld [vmem:[%s8 + $0xc8] sm:$0xff]
    %v448 = vld [vmem:[%s8 + $0xd0] sm:$0xff]
    %v449 = vld [vmem:[%s8 + $0xd8] sm:$0xff]
    %v450 = vld [vmem:[%s8 + $0xe0] sm:$0xff]
    %v451 = vld [vmem:[%s8 + $0xe8] sm:$0xff]
    %v452 = vld [vmem:[%s8 + $0xf0] sm:$0xff]
    %v453 = vld [vmem:[%s8 + $0xf8] sm:$0xff]
    %v454 = vld [vmem:[%s8 + $0x100] sm:$0xff]
    %v455 = vld [vmem:[%s8 + $0x108] sm:$0xff]
    %v456 = vld [vmem:[%s8 + $0x110] sm:$0xff]
    %v457 = vld [vmem:[%s8 + $0x118] sm:$0xff]
    %v458 = vld [vmem:[%s8 + $0x120] sm:$0xff]
    %v459 = vld [vmem:[%s8 + $0x128] sm:$0xff]
    %v460 = vld [vmem:[%s8 + $0x130] sm:$0xff]
    %v461 = vld [vmem:[%s8 + $0x138] sm:$0xff]
    %v462 = vld [vmem:[%s8 + $0x140] sm:$0xff]
    %v463 = vld [vmem:[%s8 + $0x148] sm:$0xff]
    %v464 = vld [vmem:[%s8 + $0x150] sm:$0xff]
    %v465 = vld [vmem:[%s8 + $0x158] sm:$0xff]
    %v466 = vld [vmem:[%s8 + $0x160] sm:$0xff]
    %v467 = vld [vmem:[%s8 + $0x168] sm:$0xff]
    %v468 = vld [vmem:[%s8 + $0x170] sm:$0xff]
    %v469 = vld [vmem:[%s8 + $0x178] sm:$0xff]
    %470 = vmatprep.subr.mxu0 0.0
    %471 = vmatpush1.msra.mxu0 %v422
    %472 = vmatprep.subr.mxu0 0.0
    %473 = vmatpush1.msra.mxu0 %v423
    %474 = vmatprep.subr.mxu0 0.0
    %475 = vmatpush1.msra.mxu0 %v424
    %476 = vmatprep.subr.mxu0 0.0
    %477 = vmatpush1.msra.mxu0 %v425
    %478 = vmatprep.subr.mxu0 0.0
    %479 = vmatpush1.msra.mxu0 %v426
    %480 = vmatprep.subr.mxu0 0.0
    %481 = vmatpush1.msra.mxu0 %v427
    %482 = vmatprep.subr.mxu0 0.0
    %483 = vmatpush1.msra.mxu0 %v428
    %484 = vmatprep.subr.mxu0 0.0
    %485 = vmatpush1.msra.mxu0 %v429
    %486 = vmatprep.subr.mxu0 0.0
    %487 = vmatpush1.msra.mxu0 %v430
    %488 = vmatprep.subr.mxu0 0.0
    %489 = vmatpush1.msra.mxu0 %v431
    %490 = vmatprep.subr.mxu0 0.0
    %491 = vmatpush1.msra.mxu0 %v432
    %492 = vmatprep.subr.mxu0 0.0
    %493 = vmatpush1.msra.mxu0 %v433
    %494 = vmatprep.subr.mxu0 0.0
    %495 = vmatpush1.msra.mxu0 %v434
    %496 = vmatprep.subr.mxu0 0.0
    %497 = vmatpush1.msra.mxu0 %v435
    %498 = vmatprep.subr.mxu0 0.0
    %499 = vmatpush1.msra.mxu0 %v436
    %500 = vmatprep.subr.mxu0 0.0
    %501 = vmatpush1.msra.mxu0 %v437
    %502 = vmatprep.subr.mxu0 0.0
    %503 = vmatpush1.msra.mxu0 %v438
    %504 = vmatprep.subr.mxu0 0.0
    %505 = vmatpush1.msra.mxu0 %v439
    %506 = vmatprep.subr.mxu0 0.0
    %507 = vmatpush1.msra.mxu0 %v440
    %508 = vmatprep.subr.mxu0 0.0
    %509 = vmatpush1.msra.mxu0 %v441
    %510 = vmatprep.subr.mxu0 0.0
    %511 = vmatpush1.msra.mxu0 %v442
    %512 = vmatprep.subr.mxu0 0.0
    %513 = vmatpush1.msra.mxu0 %v443
    %514 = vmatprep.subr.mxu0 0.0
    %515 = vmatpush1.msra.mxu0 %v444
    %516 = vmatprep.subr.mxu0 0.0
    %517 = vmatpush1.msra.mxu0 %v445
    %518 = vmatprep.subr.mxu0 0.0
    %519 = vmatpush1.msra.mxu0 %v446
    %520 = vmatprep.subr.mxu0 0.0
    %521 = vmatpush1.msra.mxu0 %v447
    %522 = vmatprep.subr.mxu0 0.0
    %523 = vmatpush1.msra.mxu0 %v448
    %524 = vmatprep.subr.mxu0 0.0
    %525 = vmatpush1.msra.mxu0 %v449
    %526 = vmatprep.subr.mxu0 0.0
    %527 = vmatpush1.msra.mxu0 %v450
    %528 = vmatprep.subr.mxu0 0.0
    %529 = vmatpush1.msra.mxu0 %v451
    %530 = vmatprep.subr.mxu0 0.0
    %531 = vmatpush1.msra.mxu0 %v452
    %532 = vmatprep.subr.mxu0 0.0
    %533 = vmatpush1.msra.mxu0 %v453
    %534 = vmatprep.mubr.f32.mxu0 %v418
    %535 = vmatmul.mubr.f32.gmra.mrb[0].mxu0 %v417
    %v536 = vpop.f32.mrb[0].mxu0
    %v537 = vadd.f32 0.0, %v536
    %v538 = vpop.f32.mrb[0].mxu0
    %539 = vdwg.mxu0
    %540 = vmatprep.subr.mxu0 0.0
    %541 = vmatpush1.msra.mxu0 %v454
    %542 = vmatprep.subr.mxu0 0.0
    %543 = vmatpush1.msra.mxu0 %v455
    %544 = vmatprep.subr.mxu0 0.0
    %545 = vmatpush1.msra.mxu0 %v456
    %546 = vmatprep.subr.mxu0 0.0
    %547 = vmatpush1.msra.mxu0 %v457
    %548 = vmatprep.subr.mxu0 0.0
    %549 = vmatpush1.msra.mxu0 %v458
    %550 = vmatprep.subr.mxu0 0.0
    %551 = vmatpush1.msra.mxu0 %v459
    %552 = vmatprep.subr.mxu0 0.0
    %553 = vmatpush1.msra.mxu0 %v460
    %554 = vmatprep.subr.mxu0 0.0
    %555 = vmatpush1.msra.mxu0 %v461
    %556 = vmatprep.subr.mxu0 0.0
    %557 = vmatpush1.msra.mxu0 %v462
    %558 = vmatprep.subr.mxu0 0.0
    %559 = vmatpush1.msra.mxu0 %v463
    %560 = vmatprep.subr.mxu0 0.0
    %561 = vmatpush1.msra.mxu0 %v464
    %562 = vmatprep.subr.mxu0 0.0
    %563 = vmatpush1.msra.mxu0 %v465
    %564 = vmatprep.subr.mxu0 0.0
    %565 = vmatpush1.msra.mxu0 %v466
    %566 = vmatprep.subr.mxu0 0.0
    %567 = vmatpush1.msra.mxu0 %v467
    %568 = vmatprep.subr.mxu0 0.0
    %569 = vmatpush1.msra.mxu0 %v468
    %570 = vmatprep.subr.mxu0 0.0
    %571 = vmatpush1.msra.mxu0 %v469
    %572 = vmatprep.subr.mxu0 0.0
    %573 = vmatpush1.msra.mxu0 0.0
    %574 = vmatprep.subr.mxu0 0.0
    %575 = vmatpush1.msra.mxu0 0.0
    %576 = vmatprep.subr.mxu0 0.0
    %577 = vmatpush1.msra.mxu0 0.0
    %578 = vmatprep.subr.mxu0 0.0
    %579 = vmatpush1.msra.mxu0 0.0
    %580 = vmatprep.subr.mxu0 0.0
    %581 = vmatpush1.msra.mxu0 0.0
    %582 = vmatprep.subr.mxu0 0.0
    %583 = vmatpush1.msra.mxu0 0.0
    %584 = vmatprep.subr.mxu0 0.0
    %585 = vmatpush1.msra.mxu0 0.0
    %586 = vmatprep.subr.mxu0 0.0
    %587 = vmatpush1.msra.mxu0 0.0
    %588 = vmatprep.subr.mxu0 0.0
    %589 = vmatpush1.msra.mxu0 0.0
    %590 = vmatprep.subr.mxu0 0.0
    %591 = vmatpush1.msra.mxu0 0.0
    %592 = vmatprep.subr.mxu0 0.0
    %593 = vmatpush1.msra.mxu0 0.0
    %594 = vmatprep.subr.mxu0 0.0
    %595 = vmatpush1.msra.mxu0 0.0
    %596 = vmatprep.subr.mxu0 0.0
    %597 = vmatpush1.msra.mxu0 0.0
    %598 = vmatprep.subr.mxu0 0.0
    %599 = vmatpush1.msra.mxu0 0.0
    %600 = vmatprep.subr.mxu0 0.0
    %601 = vmatpush1.msra.mxu0 0.0
    %602 = vmatprep.subr.mxu0 0.0
    %603 = vmatpush1.msra.mxu0 0.0
    %604 = vmatprep.mubr.f32.mxu0 0.0
    %605 = vmatmul.mubr.f32.gmra.mrb[0].mxu0 %v419
    %v606 = vpop.f32.mrb[0].mxu0
    %v607 = vadd.f32 %v537, %v606
    %v608 = vpop.f32.mrb[0].mxu0
    %609 = vdwg.mxu0
    %v611 = vsel %vm206, %v217, 0
    %613 = vmatprep.subr.mxu0 0.0
    %614 = vmatpush1.msra.mxu0 %v420
    %615 = vmatprep.subr.mxu0 0.0
    %616 = vmatpush1.msra.mxu0 %v421
    %617 = vmatprep.subr.mxu0 0.0
    %618 = vmatpush1.msra.mxu0 0.0
    %619 = vmatprep.subr.mxu0 0.0
    %620 = vmatpush1.msra.mxu0 0.0
    %621 = vmatprep.subr.mxu0 0.0
    %622 = vmatpush1.msra.mxu0 0.0
    %623 = vmatprep.subr.mxu0 0.0
    %624 = vmatpush1.msra.mxu0 0.0
    %625 = vmatprep.subr.mxu0 0.0
    %626 = vmatpush1.msra.mxu0 0.0
    %627 = vmatprep.subr.mxu0 0.0
    %628 = vmatpush1.msra.mxu0 0.0
    %629 = vmatprep.subr.mxu0 0.0
    %630 = vmatpush1.msra.mxu0 0.0
    %631 = vmatprep.subr.mxu0 0.0
    %632 = vmatpush1.msra.mxu0 0.0
    %633 = vmatprep.subr.mxu0 0.0
    %634 = vmatpush1.msra.mxu0 0.0
    %635 = vmatprep.subr.mxu0 0.0
    %636 = vmatpush1.msra.mxu0 0.0
    %637 = vmatprep.subr.mxu0 0.0
    %638 = vmatpush1.msra.mxu0 0.0
    %639 = vmatprep.subr.mxu0 0.0
    %640 = vmatpush1.msra.mxu0 0.0
    %641 = vmatprep.subr.mxu0 0.0
    %642 = vmatpush1.msra.mxu0 0.0
    %643 = vmatprep.subr.mxu0 0.0
    %644 = vmatpush1.msra.mxu0 0.0
    %645 = vmatprep.subr.mxu0 0.0
    %646 = vmatpush1.msra.mxu0 0.0
    %647 = vmatprep.subr.mxu0 0.0
    %648 = vmatpush1.msra.mxu0 0.0
    %649 = vmatprep.subr.mxu0 0.0
    %650 = vmatpush1.msra.mxu0 0.0
    %651 = vmatprep.subr.mxu0 0.0
    %652 = vmatpush1.msra.mxu0 0.0
    %653 = vmatprep.subr.mxu0 0.0
    %654 = vmatpush1.msra.mxu0 0.0
    %655 = vmatprep.subr.mxu0 0.0
    %656 = vmatpush1.msra.mxu0 0.0
    %657 = vmatprep.subr.mxu0 0.0
    %658 = vmatpush1.msra.mxu0 0.0
    %659 = vmatprep.subr.mxu0 0.0
    %660 = vmatpush1.msra.mxu0 0.0
    %661 = vmatprep.subr.mxu0 0.0
    %662 = vmatpush1.msra.mxu0 0.0
    %663 = vmatprep.subr.mxu0 0.0
    %664 = vmatpush1.msra.mxu0 0.0
    %665 = vmatprep.subr.mxu0 0.0
    %666 = vmatpush1.msra.mxu0 0.0
    %667 = vmatprep.subr.mxu0 0.0
    %668 = vmatpush1.msra.mxu0 0.0
    %669 = vmatprep.subr.mxu0 0.0
    %670 = vmatpush1.msra.mxu0 0.0
    %671 = vmatprep.subr.mxu0 0.0
    %672 = vmatpush1.msra.mxu0 0.0
    %673 = vmatprep.subr.mxu0 0.0
    %674 = vmatpush1.msra.mxu0 0.0
    %675 = vmatprep.subr.mxu0 0.0
    %676 = vmatpush1.msra.mxu0 0.0
    %677 = vmatprep.mubr.f32.mxu0 0.0
    %678 = vmatmul.mubr.f32.gmra.mrb[0].mxu0 %v611
    %v679 = vpop.f32.mrb[0].mxu0
    %v680 = vadd.f32 %v607, %v679
    %v681 = vpop.f32.mrb[0].mxu0
    %682 = vdwg.mxu0
    %v683 = vld [vmem:[%s9] sm:$0x1]
    %v685 = vlaneseq
    %v686 = vshrl.u32 %v685, 7
    %v687 = vsub.s32 0, %v686
    %v688 = vrot.slane %v683, %v687
    %v690 = vadd.f32 %v680, %v688
    %691 = vst.msk [vmem:[#allocation2] sm:$0xff] %vm48, %v690
    // Predicated region
    $region42: #{tpu_custom_call.1} parent=1 // pred_check
      _
    $region43: #{tpu_custom_call.1} parent=1 // pred_check_branch
      %693 = sbr.rel (0) target = $region45
    $region44: #{tpu_custom_call.1} parent=1 // pred_region
      %s695 = ssub.s32 128, 128
      %696 = vsyncadd [#allocation3], %s695
      %s698 = sshll.u32 [#allocation2], 4
      %s699 = int_to_ptr.vmem [resolvable:$true] %s698
      %701 = dma.vmem_to_hbm [thread:$0]  %s699, 128, %s10, [#allocation3]
    $region45: #{tpu_custom_call.1} parent=1 // pred_fallthru
      _
    // Predicated region
    $region46: #{tpu_custom_call.1} parent=1 // pred_check
      _
    $region47: #{tpu_custom_call.1} parent=1 // pred_check_branch
      %703 = sbr.rel (0) target = $region49
    $region48: #{tpu_custom_call.1} parent=1 // pred_region
      %704 = dma.done [#allocation3], 128
    $region49: #{tpu_custom_call.1} parent=1 // pred_fallthru
      _
    %705 = vsyncpa [#allocation3], 1

</llo_original>
